<compile_context>
chip_gen: v7x
topology: tpu7x:2x2x1
jax: 0.10.0
libtpu: 0.0.40
codegen_flags: <defaults>
</compile_context>

<pallas_src>
import functools

import jax
import jax.numpy as jnp
from jax.experimental import pallas as pl
from jax.experimental.pallas import tpu as pltpu


def _round_up(x, m):
    return (x + m - 1) // m * m


def _encoder_kernel(s_ref, a_ref, w_ref, b_ref, out_ref, *,
                    s_dim, a_dim, s_pad, a_pad, h_pad):
    """Fused MLP: [state|action] -> relu(fc1) -> relu(fc2) -> [mean|logvar|0]."""
    compute_dtype = w_ref.dtype

    # Static views into the packed weight slab (row offsets are multiples of 8,
    # the single column block is 128 lanes wide).
    w1s = w_ref[0:s_dim, :]                                   # [s_dim, h_pad]
    w1a = w_ref[s_pad:s_pad + a_dim, :]                       # [a_dim, h_pad]
    r0 = s_pad + a_pad
    w2 = w_ref[r0:r0 + h_pad, :]                              # [h_pad, h_pad]
    wh = w_ref[r0 + h_pad:r0 + 2 * h_pad, :]                  # [h_pad, h_pad]
    b1 = b_ref[:, 0:h_pad]                                    # [1, h_pad] (f32)
    b2 = b_ref[:, h_pad:2 * h_pad]
    bh = b_ref[:, 2 * h_pad:3 * h_pad]

    # fc1: the concat is folded into two narrow dots (K = s_dim and K = a_dim),
    # accumulated in f32.  Bias + ReLU in f32, cast to compute dtype only right
    # before the next dot (v5e-safe).
    h1 = (jnp.dot(s_ref[...], w1s, preferred_element_type=jnp.float32)
          + jnp.dot(a_ref[...], w1a, preferred_element_type=jnp.float32) + b1)
    h1 = jnp.maximum(h1, 0.0).astype(compute_dtype)

    h2 = jnp.maximum(
        jnp.dot(h1, w2, preferred_element_type=jnp.float32) + b2, 0.0
    ).astype(compute_dtype)

    # Fused mean|logvar head: one lane-dense 128-wide store.
    out = jnp.dot(h2, wh, preferred_element_type=jnp.float32) + bh
    out_ref[...] = out.astype(out_ref.dtype)


def pack_params(p, state_embed, action_embed, hidden_dim, task_dim,
                weight_dtype=jnp.bfloat16):
    """Packs the 8 Linear params into one weight slab + one f32 bias row.

    Slab rows: [w1(state) | w1(action) | w2 | mean|logvar head], each block
    zero-padded so row offsets are multiples of 8 and columns are 128 lanes.
    Zeros propagate to zeros through dot/bias/relu, so results are unchanged.
    """
    s_pad = _round_up(state_embed, 8)
    a_pad = _round_up(action_embed, 8)
    h_pad = _round_up(max(hidden_dim, 2 * task_dim), 128)

    w1s = jnp.zeros((s_pad, h_pad), jnp.float32)
    w1s = w1s.at[:state_embed, :hidden_dim].set(p["w1"][:state_embed])
    w1a = jnp.zeros((a_pad, h_pad), jnp.float32)
    w1a = w1a.at[:action_embed, :hidden_dim].set(p["w1"][state_embed:])
    w2 = jnp.zeros((h_pad, h_pad), jnp.float32)
    w2 = w2.at[:hidden_dim, :hidden_dim].set(p["w2"])
    wh = jnp.zeros((h_pad, h_pad), jnp.float32)
    wh = wh.at[:hidden_dim, :task_dim].set(p["wm"])
    wh = wh.at[:hidden_dim, task_dim:2 * task_dim].set(p["wl"])
    w_slab = jnp.concatenate([w1s, w1a, w2, wh], axis=0).astype(weight_dtype)

    b = jnp.zeros((1, 3 * h_pad), jnp.float32)          # biases stay f32
    b = b.at[0, :hidden_dim].set(p["b1"])
    b = b.at[0, h_pad:h_pad + hidden_dim].set(p["b2"])
    b = b.at[0, 2 * h_pad:2 * h_pad + task_dim].set(p["bm"])
    b = b.at[0, 2 * h_pad + task_dim:2 * h_pad + 2 * task_dim].set(p["bl"])

    meta = dict(s_dim=state_embed, a_dim=action_embed,
                s_pad=s_pad, a_pad=a_pad, h_pad=h_pad, task=task_dim)
    return w_slab, b, meta


def _choose_batch_tile(bp, max_batch_tile, min_grid_steps=2):
    """bp is a multiple of 8; returns a sublane-aligned batch tile."""
    max_batch_tile = max(8, _round_up(max_batch_tile, 8))
    if bp <= 1024:
        # Small batch: one (or few) blocks; splitting only adds step overhead.
        return min(bp, max_batch_tile)
    # Large batch: keep tiles big but guarantee >= min_grid_steps grid steps so
    # both v7x TensorCores get work via dimension_semantics=("parallel",).
    tb = _round_up(-(-bp // min_grid_steps), 512)
    return max(8, min(max_batch_tile, tb))


def state_action_encoder(state, action, w_slab, bias, meta, *,
                         max_batch_tile=4096, act_dtype=None,
                         vmem_limit_bytes=32 * 1024 * 1024):
    """Pallas forward: returns (mean [B, T], logvar [B, T])."""
    B = state.shape[0]
    s_dim, a_dim = meta["s_dim"], meta["a_dim"]
    s_pad, a_pad, h_pad, task = meta["s_pad"], meta["a_pad"], meta["h_pad"], meta["task"]
    act_dtype = w_slab.dtype if act_dtype is None else act_dtype

    state = state.astype(act_dtype)
    action = action.astype(act_dtype)
    # Pad batch only to the 8-row sublane granule (<= 7 rows, skipped if B%8==0);
    # the grid uses cdiv with a partial last block -> no tb-granular over-padding.
    bp = _round_up(B, 8)
    if bp != B:
        state = jnp.pad(state, ((0, bp - B), (0, 0)))
        action = jnp.pad(action, ((0, bp - B), (0, 0)))

    tb = _choose_batch_tile(bp, max_batch_tile)
    grid = (pl.cdiv(bp, tb),)

    kernel = functools.partial(_encoder_kernel, s_dim=s_dim, a_dim=a_dim,
                               s_pad=s_pad, a_pad=a_pad, h_pad=h_pad)
    out = pl.pallas_call(
        kernel,
        out_shape=jax.ShapeDtypeStruct((bp, h_pad), act_dtype),
        grid=grid,
        in_specs=[
            pl.BlockSpec((tb, s_dim), lambda i: (i, 0)),     # state rows (narrow)
            pl.BlockSpec((tb, a_dim), lambda i: (i, 0)),     # action rows (narrow)
            pl.BlockSpec(w_slab.shape, lambda i: (0, 0)),    # resident weight slab
            pl.BlockSpec(bias.shape, lambda i: (0, 0)),      # resident bias row
        ],
        out_specs=pl.BlockSpec((tb, h_pad), lambda i: (i, 0)),
        compiler_params=pltpu.CompilerParams(
            dimension_semantics=("parallel",),               # megacore on v7x
            vmem_limit_bytes=vmem_limit_bytes),              # v5e large-tile safety
    )(state, action, w_slab, bias)

    # mean packed in [:task], logvar in [task:2*task] of the 128-lane output.
    return out[:B, :task], out[:B, task:2 * task]


def init_params(key, state_embed=10, action_embed=10, hidden_dim=64, task_dim=32):
    """Synthetic params mirroring the nn.Linear shapes (stored as [in, out])."""
    ks = jax.random.split(key, 8)
    in1 = state_embed + action_embed

    def u(k, shape, fan_in):
        bound = 1.0 / jnp.sqrt(fan_in)
        return jax.random.uniform(k, shape, jnp.float32, -bound, bound)

    return {
        "w1": u(ks[0], (in1, hidden_dim), in1),
        "b1": u(ks[1], (hidden_dim,), in1),
        "w2": u(ks[2], (hidden_dim, hidden_dim), hidden_dim),
        "b2": u(ks[3], (hidden_dim,), hidden_dim),
        "wm": u(ks[4], (hidden_dim, task_dim), hidden_dim),
        "bm": u(ks[5], (task_dim,), hidden_dim),
        "wl": u(ks[6], (hidden_dim, task_dim), hidden_dim),
        "bl": u(ks[7], (task_dim,), hidden_dim),
    }


def _reference(state, action, p):
    hi = jax.lax.Precision.HIGHEST
    x = jnp.concatenate([state, action], axis=-1)
    h = jax.nn.relu(jnp.dot(x, p["w1"], precision=hi) + p["b1"])
    h = jax.nn.relu(jnp.dot(h, p["w2"], precision=hi) + p["b2"])
    return (jnp.dot(h, p["wm"], precision=hi) + p["bm"],
            jnp.dot(h, p["wl"], precision=hi) + p["bl"])


if __name__ == "__main__":
    key = jax.random.PRNGKey(0)
    k_p, k_s, k_a = jax.random.split(key, 3)

    B = 8
    STATE_EMBED = 10
    ACTION_EMBED = 10
    HIDDEN = 64
    TASK = 32

    params = init_params(k_p, STATE_EMBED, ACTION_EMBED, HIDDEN, TASK)
    state = jax.random.normal(k_s, (B, STATE_EMBED), jnp.float32)
    action = jax.random.normal(k_a, (B, ACTION_EMBED), jnp.float32)
    ref_mean, ref_logvar = _reference(state, action, params)

    # 1) f32 parameter path: tight check that packing / padding / concat-folding
    #    are exact.  Tolerance only covers default-precision MXU (bf16 passes)
    #    on f32 operands; any packing bug would be orders of magnitude larger.
    w32, b32, meta = pack_params(params, STATE_EMBED, ACTION_EMBED, HIDDEN, TASK,
                                 weight_dtype=jnp.float32)
    m32, l32 = state_action_encoder(state, action, w32, b32, meta)
    jax.block_until_ready((m32, l32))
    assert m32.shape == (B, TASK) and l32.shape == (B, TASK)
    assert jnp.allclose(m32, ref_mean, atol=2e-3, rtol=2e-3)
    assert jnp.allclose(l32, ref_logvar, atol=2e-3, rtol=2e-3)

    # 2) bf16 production path (default): ~2x fewer HBM bytes on a mem-bound
    #    kernel.  Tolerance sized for bf16 storage rounding through 3 layers.
    wbf, bbf, meta = pack_params(params, STATE_EMBED, ACTION_EMBED, HIDDEN, TASK,
                                 weight_dtype=jnp.bfloat16)
    mean, logvar = state_action_encoder(state, action, wbf, bbf, meta)
    jax.block_until_ready((mean, logvar))
    assert mean.shape == (B, TASK) and logvar.shape == (B, TASK)
    assert jnp.allclose(mean.astype(jnp.float32), ref_mean, atol=5e-2, rtol=5e-2)
    assert jnp.allclose(logvar.astype(jnp.float32), ref_logvar, atol=5e-2, rtol=5e-2)

    # 3) multi-block grid with a partial last block (exercises the cdiv grid,
    #    megacore-friendly tiling, and masked edge stores).
    B2 = 300
    s2 = jax.random.normal(jax.random.PRNGKey(1), (B2, STATE_EMBED), jnp.float32)
    a2 = jax.random.normal(jax.random.PRNGKey(2), (B2, ACTION_EMBED), jnp.float32)
    m2, l2 = state_action_encoder(s2, a2, wbf, bbf, meta, max_batch_tile=128)
    jax.block_until_ready((m2, l2))
    rm2, rl2 = _reference(s2, a2, params)
    assert m2.shape == (B2, TASK) and l2.shape == (B2, TASK)
    assert jnp.allclose(m2.astype(jnp.float32), rm2, atol=5e-2, rtol=5e-2)
    assert jnp.allclose(l2.astype(jnp.float32), rl2, atol=5e-2, rtol=5e-2)

    # TODO(synk): state_encoder / action_encoder exist in __init__ but are not
    # used in the PyTorch forward, so they are not implemented here.
    print("KERNEL_OK")
</pallas_src>

<mosaic_0001>
module attributes {stable_mosaic.version = 11 : i64} {
  func.func @_encoder_kernel(%arg0: i32, %arg1: memref<8x10xf32, #tpu.memory_space<vmem>>, %arg2: memref<8x10xf32, #tpu.memory_space<vmem>>, %arg3: memref<288x128xf32, #tpu.memory_space<vmem>>, %arg4: memref<1x384xf32, #tpu.memory_space<vmem>>, %arg5: memref<8x128xf32, #tpu.memory_space<vmem>>) attributes {dimension_semantics = [#tpu.dimension_semantics<parallel>], iteration_bounds = array<i64: 1>, scalar_prefetch = 0 : i64, scratch_operands = 0 : i64, tpu.core_type = #tpu.core_type<tc>, window_params = [{transform_indices = @transform_0, window_bounds = array<i64: 8, 10>}, {transform_indices = @transform_1, window_bounds = array<i64: 8, 10>}, {pipeline_mode = #tpu.pipeline_mode<synchronous>, transform_indices = @transform_2, window_bounds = array<i64: 288, 128>}, {pipeline_mode = #tpu.pipeline_mode<synchronous>, transform_indices = @transform_3, window_bounds = array<i64: 1, 384>}, {transform_indices = @transform_4, window_bounds = array<i64: 8, 128>}]} {
    %c0 = arith.constant 0 : index
    %c0_0 = arith.constant 0 : index
    %0 = vector.load %arg3[%c0, %c0_0] : memref<288x128xf32, #tpu.memory_space<vmem>>, vector<10x128xf32>
    %c16 = arith.constant 16 : index
    %c0_1 = arith.constant 0 : index
    %1 = vector.load %arg3[%c16, %c0_1] : memref<288x128xf32, #tpu.memory_space<vmem>>, vector<10x128xf32>
    %c32 = arith.constant 32 : index
    %c0_2 = arith.constant 0 : index
    %2 = vector.load %arg3[%c32, %c0_2] : memref<288x128xf32, #tpu.memory_space<vmem>>, vector<128x128xf32>
    %c160 = arith.constant 160 : index
    %c0_3 = arith.constant 0 : index
    %3 = vector.load %arg3[%c160, %c0_3] : memref<288x128xf32, #tpu.memory_space<vmem>>, vector<128x128xf32>
    %c0_4 = arith.constant 0 : index
    %c0_5 = arith.constant 0 : index
    %4 = vector.load %arg4[%c0_4, %c0_5] : memref<1x384xf32, #tpu.memory_space<vmem>>, vector<1x128xf32>
    %c0_6 = arith.constant 0 : index
    %c128 = arith.constant 128 : index
    %5 = vector.load %arg4[%c0_6, %c128] : memref<1x384xf32, #tpu.memory_space<vmem>>, vector<1x128xf32>
    %c0_7 = arith.constant 0 : index
    %c256 = arith.constant 256 : index
    %6 = vector.load %arg4[%c0_7, %c256] : memref<1x384xf32, #tpu.memory_space<vmem>>, vector<1x128xf32>
    %c0_8 = arith.constant 0 : index
    %c0_9 = arith.constant 0 : index
    %7 = vector.load %arg1[%c0_8, %c0_9] : memref<8x10xf32, #tpu.memory_space<vmem>>, vector<8x10xf32>
    %cst = arith.constant dense<0.000000e+00> : vector<8x128xf32>
    %8 = tpu.matmul %7, %0, %cst {dimension_numbers = #tpu.dot_dimension_numbers<[1], [0], [0], [1], [0, 0, 1, 1], [], []>} : vector<8x10xf32>, vector<10x128xf32>, vector<8x128xf32> -> vector<8x128xf32>
    %c0_10 = arith.constant 0 : index
    %c0_11 = arith.constant 0 : index
    %9 = vector.load %arg2[%c0_10, %c0_11] : memref<8x10xf32, #tpu.memory_space<vmem>>, vector<8x10xf32>
    %cst_12 = arith.constant dense<0.000000e+00> : vector<8x128xf32>
    %10 = tpu.matmul %9, %1, %cst_12 {dimension_numbers = #tpu.dot_dimension_numbers<[1], [0], [0], [1], [0, 0, 1, 1], [], []>} : vector<8x10xf32>, vector<10x128xf32>, vector<8x128xf32> -> vector<8x128xf32>
    %11 = arith.addf %8, %10 : vector<8x128xf32>
    %12 = vector.broadcast %4 : vector<1x128xf32> to vector<8x128xf32>
    %13 = arith.addf %11, %12 : vector<8x128xf32>
    %cst_13 = arith.constant 0.000000e+00 : f32
    %14 = vector.broadcast %cst_13 : f32 to vector<8x128xf32>
    %15 = arith.maximumf %13, %14 : vector<8x128xf32>
    %cst_14 = arith.constant dense<0.000000e+00> : vector<8x128xf32>
    %16 = tpu.matmul %15, %2, %cst_14 {dimension_numbers = #tpu.dot_dimension_numbers<[1], [0], [0], [1], [0, 0, 1, 1], [], []>} : vector<8x128xf32>, vector<128x128xf32>, vector<8x128xf32> -> vector<8x128xf32>
    %17 = vector.broadcast %5 : vector<1x128xf32> to vector<8x128xf32>
    %18 = arith.addf %16, %17 : vector<8x128xf32>
    %cst_15 = arith.constant 0.000000e+00 : f32
    %19 = vector.broadcast %cst_15 : f32 to vector<8x128xf32>
    %20 = arith.maximumf %18, %19 : vector<8x128xf32>
    %cst_16 = arith.constant dense<0.000000e+00> : vector<8x128xf32>
    %21 = tpu.matmul %20, %3, %cst_16 {dimension_numbers = #tpu.dot_dimension_numbers<[1], [0], [0], [1], [0, 0, 1, 1], [], []>} : vector<8x128xf32>, vector<128x128xf32>, vector<8x128xf32> -> vector<8x128xf32>
    %22 = vector.broadcast %6 : vector<1x128xf32> to vector<8x128xf32>
    %23 = arith.addf %21, %22 : vector<8x128xf32>
    %c0_17 = arith.constant 0 : index
    %c0_18 = arith.constant 0 : index
    %24 = vector.load %arg5[%c0_17, %c0_18] : memref<8x128xf32, #tpu.memory_space<vmem>>, vector<8x128xf32>
    tpu.vector_store %arg5[%c0_17, %c0_18], %23 {strides = array<i32>} : memref<8x128xf32, #tpu.memory_space<vmem>>, vector<8x128xf32>,
    return
  }
  func.func @transform_0(%arg0: i32) -> (i32, i32) {
    %c0_i32 = arith.constant 0 : i32
    %c0_i32_0 = arith.constant 0 : i32
    return %arg0, %c0_i32 : i32, i32
  }
  func.func @transform_1(%arg0: i32) -> (i32, i32) {
    %c0_i32 = arith.constant 0 : i32
    %c0_i32_0 = arith.constant 0 : i32
    return %arg0, %c0_i32 : i32, i32
  }
  func.func @transform_2(%arg0: i32) -> (i32, i32) {
    %c0_i32 = arith.constant 0 : i32
    %c0_i32_0 = arith.constant 0 : i32
    %c0_i32_1 = arith.constant 0 : i32
    return %c0_i32, %c0_i32_0 : i32, i32
  }
  func.func @transform_3(%arg0: i32) -> (i32, i32) {
    %c0_i32 = arith.constant 0 : i32
    %c0_i32_0 = arith.constant 0 : i32
    %c0_i32_1 = arith.constant 0 : i32
    return %c0_i32, %c0_i32_0 : i32, i32
  }
  func.func @transform_4(%arg0: i32) -> (i32, i32) {
    %c0_i32 = arith.constant 0 : i32
    %c0_i32_0 = arith.constant 0 : i32
    return %arg0, %c0_i32 : i32, i32
  }
}

</mosaic_0001>

<llo_original>
// kernel: tpu_custom_call.1
$region0: #{tpu_custom_call.1}
  #allocation0 [shape = 'u32[]', space=smem, size = 0x4, offset = 0x4, fixed_abs, tag = 'smem constant byte address 0x4 - core index']
  #allocation1 [shape = 'u32[144,128]{1,0:T(1,128)}', space=vmem, size = 0x12000, scoped, tag = 'internal scratch']
  %s0 = inlined_call_operand.hbm [shape: f32[8,10], index: 0, kind: input, shape index: {}]
  %s1 = inlined_call_operand.hbm [shape: f32[8,10], index: 1, kind: input, shape index: {}]
  %s2 = inlined_call_operand.hbm [shape: f32[288,128], index: 2, kind: input, shape index: {}]
  %s3 = inlined_call_operand.vmem [shape: f32[1,384], index: 3, kind: input, shape index: {}]
  %s4 = inlined_call_operand.hbm [shape: f32[8,128], index: 4, kind: output, shape index: {}]
  %s5 = sld [smem:[#allocation0]]
  $region38: #{tpu_custom_call.1} parent=0
    _
  %s7 = ssub.s32 1, %s5
  %s8 = scalar_select 0, %s7, %s5
  $region1: #{tpu_custom_call.1} parent=0
    #allocation2 [shape = 'u8[4096]{0}', space=vmem, size = 0x1000, scoped, tag = 'input window, operand 0, single buffered']
    #allocation3 [shape = 's32[1]{0}', space=sflag, size = 0x4, scoped, tag = 'scoped memory for tpu_custom_call.1']
    #allocation4 [shape = 's32[1]{0}', space=sflag, size = 0x4, scoped, tag = 'scoped memory for tpu_custom_call.1']
    #allocation5 [shape = 'u8[4096]{0}', space=vmem, size = 0x1000, scoped, tag = 'input window, operand 1, single buffered']
    #allocation6 [shape = 's32[1]{0}', space=sflag, size = 0x4, scoped, tag = 'scoped memory for tpu_custom_call.1']
    #allocation7 [shape = 'u8[147456]{0}', space=vmem, size = 0x24000, scoped, tag = 'input window, operand 2, single buffered']
    #allocation8 [shape = 'u8[4096]{0}', space=vmem, size = 0x1000, scoped, tag = 'output window, operand 0, single buffered']
    %9 = vsyncpa [#allocation3], 0
    %10 = vsyncpa [#allocation6], 0
    %11 = vsyncpa [#allocation4], 0
    // Predicated region
    $region2: #{tpu_custom_call.1} parent=1 // pred_check
      _
    $region3: #{tpu_custom_call.1} parent=1 // pred_check_branch
      %13 = sbr.rel (0) target = $region5
    $region4: #{tpu_custom_call.1} parent=1 // pred_region
      %s15 = ssub.s32 128, 128
      %16 = vsyncadd [#allocation3], %s15
      %s18 = sshll.u32 [#allocation2], 4
      %s19 = int_to_ptr.vmem [resolvable:$true] %s18
      %21 = dma.hbm_to_vmem [thread:$0]  %s0, 128, %s19, [#allocation3]
    $region5: #{tpu_custom_call.1} parent=1 // pred_fallthru
      _
    // Predicated region
    $region6: #{tpu_custom_call.1} parent=1 // pred_check
      _
    $region7: #{tpu_custom_call.1} parent=1 // pred_check_branch
      %23 = sbr.rel (0) target = $region9
    $region8: #{tpu_custom_call.1} parent=1 // pred_region
      %s25 = ssub.s32 128, 128
      %26 = vsyncadd [#allocation6], %s25
      %s28 = sshll.u32 [#allocation5], 4
      %s29 = int_to_ptr.vmem [resolvable:$true] %s28
      %31 = dma.hbm_to_vmem [thread:$0]  %s1, 128, %s29, [#allocation6]
    $region9: #{tpu_custom_call.1} parent=1 // pred_fallthru
      _
    // Predicated region
    $region10: #{tpu_custom_call.1} parent=1 // pred_check
      _
    $region11: #{tpu_custom_call.1} parent=1 // pred_check_branch
      %33 = sbr.rel (0) target = $region13
    $region12: #{tpu_custom_call.1} parent=1 // pred_region
      %s35 = ssub.s32 4608, 4608
      %36 = vsyncadd [#allocation6], %s35
      %s37 = sshll.u32 [#allocation7], 4
      %s38 = int_to_ptr.vmem [resolvable:$true] %s37
      %43 = dma.hbm_to_vmem [thread:$0]  %s2, 4608, %s38, [#allocation6], 128, 128, 8
    $region13: #{tpu_custom_call.1} parent=1 // pred_fallthru
      _
    // Predicated region
    $region14: #{tpu_custom_call.1} parent=1 // pred_check
      _
    $region15: #{tpu_custom_call.1} parent=1 // pred_check_branch
      %45 = sbr.rel (0) target = $region17
    $region16: #{tpu_custom_call.1} parent=1 // pred_region
      _
    $region17: #{tpu_custom_call.1} parent=1 // pred_fallthru
      _
    // Predicated region
    $region18: #{tpu_custom_call.1} parent=1 // pred_check
      _
    $region19: #{tpu_custom_call.1} parent=1 // pred_check_branch
      %47 = sbr.rel (0) target = $region21
    $region20: #{tpu_custom_call.1} parent=1 // pred_region
      %48 = dma.done [#allocation3], 128
    $region21: #{tpu_custom_call.1} parent=1 // pred_fallthru
      _
    // Predicated region
    $region22: #{tpu_custom_call.1} parent=1 // pred_check
      _
    $region23: #{tpu_custom_call.1} parent=1 // pred_check_branch
      %50 = sbr.rel (0) target = $region25
    $region24: #{tpu_custom_call.1} parent=1 // pred_region
      %51 = dma.done [#allocation6], 128
    $region25: #{tpu_custom_call.1} parent=1 // pred_fallthru
      _
    // Predicated region
    $region26: #{tpu_custom_call.1} parent=1 // pred_check
      _
    $region27: #{tpu_custom_call.1} parent=1 // pred_check_branch
      %53 = sbr.rel (0) target = $region29
    $region28: #{tpu_custom_call.1} parent=1 // pred_region
      %54 = dma.done [#allocation6], 4608
    $region29: #{tpu_custom_call.1} parent=1 // pred_fallthru
      _
    %v55 = vld [vmem:[#allocation7] sm:$0xff]
    %v56 = vld [vmem:[#allocation7 + $0x8] sm:$0x3]
    %v57 = vld [vmem:[#allocation7 + $0x10] sm:$0xff]
    %v58 = vld [vmem:[#allocation7 + $0x18] sm:$0x3]
    %v59 = vld [vmem:[#allocation7 + $0x20] sm:$0xff]
    %v60 = vld [vmem:[#allocation7 + $0x28] sm:$0xff]
    %v61 = vld [vmem:[#allocation7 + $0x30] sm:$0xff]
    %v62 = vld [vmem:[#allocation7 + $0x38] sm:$0xff]
    %v63 = vld [vmem:[#allocation7 + $0x40] sm:$0xff]
    %v64 = vld [vmem:[#allocation7 + $0x48] sm:$0xff]
    %v65 = vld [vmem:[#allocation7 + $0x50] sm:$0xff]
    %v66 = vld [vmem:[#allocation7 + $0x58] sm:$0xff]
    %v67 = vld [vmem:[#allocation7 + $0x60] sm:$0xff]
    %v68 = vld [vmem:[#allocation7 + $0x68] sm:$0xff]
    %v69 = vld [vmem:[#allocation7 + $0x70] sm:$0xff]
    %v70 = vld [vmem:[#allocation7 + $0x78] sm:$0xff]
    %v71 = vld [vmem:[#allocation7 + $0x80] sm:$0xff]
    %v72 = vld [vmem:[#allocation7 + $0x88] sm:$0xff]
    %v73 = vld [vmem:[#allocation7 + $0x90] sm:$0xff]
    %v74 = vld [vmem:[#allocation7 + $0x98] sm:$0xff]
    %v75 = vld [vmem:[#allocation7 + $0xa0] sm:$0xff]
    %v76 = vld [vmem:[#allocation7 + $0xa8] sm:$0xff]
    %v77 = vld [vmem:[#allocation7 + $0xb0] sm:$0xff]
    %v78 = vld [vmem:[#allocation7 + $0xb8] sm:$0xff]
    %v79 = vld [vmem:[#allocation7 + $0xc0] sm:$0xff]
    %v80 = vld [vmem:[#allocation7 + $0xc8] sm:$0xff]
    %v81 = vld [vmem:[#allocation7 + $0xd0] sm:$0xff]
    %v82 = vld [vmem:[#allocation7 + $0xd8] sm:$0xff]
    %v83 = vld [vmem:[#allocation7 + $0xe0] sm:$0xff]
    %v84 = vld [vmem:[#allocation7 + $0xe8] sm:$0xff]
    %v85 = vld [vmem:[#allocation7 + $0xf0] sm:$0xff]
    %v86 = vld [vmem:[#allocation7 + $0xf8] sm:$0xff]
    %v87 = vld [vmem:[#allocation7 + $0x100] sm:$0xff]
    %v88 = vld [vmem:[#allocation7 + $0x108] sm:$0xff]
    %v89 = vld [vmem:[#allocation7 + $0x110] sm:$0xff]
    %v90 = vld [vmem:[#allocation7 + $0x118] sm:$0xff]
    %v91 = vld [vmem:[%s3] sm:$0x1]
    %v92 = vld [vmem:[%s3 + $0x1] sm:$0x1]
    %v93 = vld [vmem:[%s3 + $0x2] sm:$0x1]
    %v94 = vld [vmem:[#allocation2] sm:$0xff]
    %v95 = vld [vmem:[#allocation5] sm:$0xff]
    %vm96 = vcmask 80896
    %v98 = vsel %vm96, %v95, 0
    %vm100 = vcmask 1041408
    %v102 = vsel %vm100, %v58, 0
    %104 = vmatprep.subr.mxu0 0.0
    %105 = vmatpush1.msra.mxu0 %v57
    %106 = vmatprep.subr.mxu0 0.0
    %107 = vmatpush1.msra.mxu0 %v102
    %108 = vmatprep.subr.mxu0 0.0
    %109 = vmatpush1.msra.mxu0 0.0
    %110 = vmatprep.subr.mxu0 0.0
    %111 = vmatpush1.msra.mxu0 0.0
    %112 = vmatprep.subr.mxu0 0.0
    %113 = vmatpush1.msra.mxu0 0.0
    %114 = vmatprep.subr.mxu0 0.0
    %115 = vmatpush1.msra.mxu0 0.0
    %116 = vmatprep.subr.mxu0 0.0
    %117 = vmatpush1.msra.mxu0 0.0
    %118 = vmatprep.subr.mxu0 0.0
    %119 = vmatpush1.msra.mxu0 0.0
    %120 = vmatprep.subr.mxu0 0.0
    %121 = vmatpush1.msra.mxu0 0.0
    %122 = vmatprep.subr.mxu0 0.0
    %123 = vmatpush1.msra.mxu0 0.0
    %124 = vmatprep.subr.mxu0 0.0
    %125 = vmatpush1.msra.mxu0 0.0
    %126 = vmatprep.subr.mxu0 0.0
    %127 = vmatpush1.msra.mxu0 0.0
    %128 = vmatprep.subr.mxu0 0.0
    %129 = vmatpush1.msra.mxu0 0.0
    %130 = vmatprep.subr.mxu0 0.0
    %131 = vmatpush1.msra.mxu0 0.0
    %132 = vmatprep.subr.mxu0 0.0
    %133 = vmatpush1.msra.mxu0 0.0
    %134 = vmatprep.subr.mxu0 0.0
    %135 = vmatpush1.msra.mxu0 0.0
    %136 = vmatprep.subr.mxu0 0.0
    %137 = vmatpush1.msra.mxu0 0.0
    %138 = vmatprep.subr.mxu0 0.0
    %139 = vmatpush1.msra.mxu0 0.0
    %140 = vmatprep.subr.mxu0 0.0
    %141 = vmatpush1.msra.mxu0 0.0
    %142 = vmatprep.subr.mxu0 0.0
    %143 = vmatpush1.msra.mxu0 0.0
    %144 = vmatprep.subr.mxu0 0.0
    %145 = vmatpush1.msra.mxu0 0.0
    %146 = vmatprep.subr.mxu0 0.0
    %147 = vmatpush1.msra.mxu0 0.0
    %148 = vmatprep.subr.mxu0 0.0
    %149 = vmatpush1.msra.mxu0 0.0
    %150 = vmatprep.subr.mxu0 0.0
    %151 = vmatpush1.msra.mxu0 0.0
    %152 = vmatprep.subr.mxu0 0.0
    %153 = vmatpush1.msra.mxu0 0.0
    %154 = vmatprep.subr.mxu0 0.0
    %155 = vmatpush1.msra.mxu0 0.0
    %156 = vmatprep.subr.mxu0 0.0
    %157 = vmatpush1.msra.mxu0 0.0
    %158 = vmatprep.subr.mxu0 0.0
    %159 = vmatpush1.msra.mxu0 0.0
    %160 = vmatprep.subr.mxu0 0.0
    %161 = vmatpush1.msra.mxu0 0.0
    %162 = vmatprep.subr.mxu0 0.0
    %163 = vmatpush1.msra.mxu0 0.0
    %164 = vmatprep.subr.mxu0 0.0
    %165 = vmatpush1.msra.mxu0 0.0
    %166 = vmatprep.subr.mxu0 0.0
    %167 = vmatpush1.msra.mxu0 0.0
    %168 = vmatprep.mubr.f32.mxu0 0.0
    %169 = vmatmul.mubr.f32.gmra.mrb[0].mxu0 %v98
    %v170 = vpop.f32.mrb[0].mxu0
    %v171 = vadd.f32 0.0, %v170
    %v172 = vpop.f32.mrb[0].mxu0
    %173 = vdwg.mxu0
    %v175 = vsel %vm96, %v94, 0
    %v178 = vsel %vm100, %v56, 0
    %180 = vmatprep.subr.mxu0 0.0
    %181 = vmatpush1.msra.mxu0 %v55
    %182 = vmatprep.subr.mxu0 0.0
    %183 = vmatpush1.msra.mxu0 %v178
    %184 = vmatprep.subr.mxu0 0.0
    %185 = vmatpush1.msra.mxu0 0.0
    %186 = vmatprep.subr.mxu0 0.0
    %187 = vmatpush1.msra.mxu0 0.0
    %188 = vmatprep.subr.mxu0 0.0
    %189 = vmatpush1.msra.mxu0 0.0
    %190 = vmatprep.subr.mxu0 0.0
    %191 = vmatpush1.msra.mxu0 0.0
    %192 = vmatprep.subr.mxu0 0.0
    %193 = vmatpush1.msra.mxu0 0.0
    %194 = vmatprep.subr.mxu0 0.0
    %195 = vmatpush1.msra.mxu0 0.0
    %196 = vmatprep.subr.mxu0 0.0
    %197 = vmatpush1.msra.mxu0 0.0
    %198 = vmatprep.subr.mxu0 0.0
    %199 = vmatpush1.msra.mxu0 0.0
    %200 = vmatprep.subr.mxu0 0.0
    %201 = vmatpush1.msra.mxu0 0.0
    %202 = vmatprep.subr.mxu0 0.0
    %203 = vmatpush1.msra.mxu0 0.0
    %204 = vmatprep.subr.mxu0 0.0
    %205 = vmatpush1.msra.mxu0 0.0
    %206 = vmatprep.subr.mxu0 0.0
    %207 = vmatpush1.msra.mxu0 0.0
    %208 = vmatprep.subr.mxu0 0.0
    %209 = vmatpush1.msra.mxu0 0.0
    %210 = vmatprep.subr.mxu0 0.0
    %211 = vmatpush1.msra.mxu0 0.0
    %212 = vmatprep.subr.mxu0 0.0
    %213 = vmatpush1.msra.mxu0 0.0
    %214 = vmatprep.subr.mxu0 0.0
    %215 = vmatpush1.msra.mxu0 0.0
    %216 = vmatprep.subr.mxu0 0.0
    %217 = vmatpush1.msra.mxu0 0.0
    %218 = vmatprep.subr.mxu0 0.0
    %219 = vmatpush1.msra.mxu0 0.0
    %220 = vmatprep.subr.mxu0 0.0
    %221 = vmatpush1.msra.mxu0 0.0
    %222 = vmatprep.subr.mxu0 0.0
    %223 = vmatpush1.msra.mxu0 0.0
    %224 = vmatprep.subr.mxu0 0.0
    %225 = vmatpush1.msra.mxu0 0.0
    %226 = vmatprep.subr.mxu0 0.0
    %227 = vmatpush1.msra.mxu0 0.0
    %228 = vmatprep.subr.mxu0 0.0
    %229 = vmatpush1.msra.mxu0 0.0
    %230 = vmatprep.subr.mxu0 0.0
    %231 = vmatpush1.msra.mxu0 0.0
    %232 = vmatprep.subr.mxu0 0.0
    %233 = vmatpush1.msra.mxu0 0.0
    %234 = vmatprep.subr.mxu0 0.0
    %235 = vmatpush1.msra.mxu0 0.0
    %236 = vmatprep.subr.mxu0 0.0
    %237 = vmatpush1.msra.mxu0 0.0
    %238 = vmatprep.subr.mxu0 0.0
    %239 = vmatpush1.msra.mxu0 0.0
    %240 = vmatprep.subr.mxu0 0.0
    %241 = vmatpush1.msra.mxu0 0.0
    %242 = vmatprep.subr.mxu0 0.0
    %243 = vmatpush1.msra.mxu0 0.0
    %244 = vmatprep.mubr.f32.mxu0 0.0
    %245 = vmatmul.mubr.f32.gmra.mrb[0].mxu0 %v175
    %v246 = vpop.f32.mrb[0].mxu0
    %v247 = vadd.f32 %v171, %v246
    %v248 = vpop.f32.mrb[0].mxu0
    %249 = vdwg.mxu0
    %v251 = vlaneseq
    %v252 = vshrl.u32 %v251, 7
    %v253 = vsub.s32 0, %v252
    %v254 = vrot.slane %v91, %v253
    %v256 = vadd.f32 %v247, %v254
    %v257 = vmax.f32 %v256, 0.0
    %v259 = vlaneseq
    %v260 = vshrl.u32 %v259, 7
    %v261 = vsub.s32 0, %v260
    %v262 = vrot.slane %v92, %v261
    %264 = vmatprep.subr.mxu0 0.0
    %265 = vmatpush1.msra.mxu0 %v59
    %266 = vmatprep.subr.mxu0 0.0
    %267 = vmatpush1.msra.mxu0 %v60
    %268 = vmatprep.subr.mxu0 0.0
    %269 = vmatpush1.msra.mxu0 %v61
    %270 = vmatprep.subr.mxu0 0.0
    %271 = vmatpush1.msra.mxu0 %v62
    %272 = vmatprep.subr.mxu0 0.0
    %273 = vmatpush1.msra.mxu0 %v63
    %274 = vmatprep.subr.mxu0 0.0
    %275 = vmatpush1.msra.mxu0 %v64
    %276 = vmatprep.subr.mxu0 0.0
    %277 = vmatpush1.msra.mxu0 %v65
    %278 = vmatprep.subr.mxu0 0.0
    %279 = vmatpush1.msra.mxu0 %v66
    %280 = vmatprep.subr.mxu0 0.0
    %281 = vmatpush1.msra.mxu0 %v67
    %282 = vmatprep.subr.mxu0 0.0
    %283 = vmatpush1.msra.mxu0 %v68
    %284 = vmatprep.subr.mxu0 0.0
    %285 = vmatpush1.msra.mxu0 %v69
    %286 = vmatprep.subr.mxu0 0.0
    %287 = vmatpush1.msra.mxu0 %v70
    %288 = vmatprep.subr.mxu0 0.0
    %289 = vmatpush1.msra.mxu0 %v71
    %290 = vmatprep.subr.mxu0 0.0
    %291 = vmatpush1.msra.mxu0 %v72
    %292 = vmatprep.subr.mxu0 0.0
    %293 = vmatpush1.msra.mxu0 %v73
    %294 = vmatprep.subr.mxu0 0.0
    %295 = vmatpush1.msra.mxu0 %v74
    %296 = vmatprep.subr.mxu0 0.0
    %297 = vmatpush1.msra.mxu0 0.0
    %298 = vmatprep.subr.mxu0 0.0
    %299 = vmatpush1.msra.mxu0 0.0
    %300 = vmatprep.subr.mxu0 0.0
    %301 = vmatpush1.msra.mxu0 0.0
    %302 = vmatprep.subr.mxu0 0.0
    %303 = vmatpush1.msra.mxu0 0.0
    %304 = vmatprep.subr.mxu0 0.0
    %305 = vmatpush1.msra.mxu0 0.0
    %306 = vmatprep.subr.mxu0 0.0
    %307 = vmatpush1.msra.mxu0 0.0
    %308 = vmatprep.subr.mxu0 0.0
    %309 = vmatpush1.msra.mxu0 0.0
    %310 = vmatprep.subr.mxu0 0.0
    %311 = vmatpush1.msra.mxu0 0.0
    %312 = vmatprep.subr.mxu0 0.0
    %313 = vmatpush1.msra.mxu0 0.0
    %314 = vmatprep.subr.mxu0 0.0
    %315 = vmatpush1.msra.mxu0 0.0
    %316 = vmatprep.subr.mxu0 0.0
    %317 = vmatpush1.msra.mxu0 0.0
    %318 = vmatprep.subr.mxu0 0.0
    %319 = vmatpush1.msra.mxu0 0.0
    %320 = vmatprep.subr.mxu0 0.0
    %321 = vmatpush1.msra.mxu0 0.0
    %322 = vmatprep.subr.mxu0 0.0
    %323 = vmatpush1.msra.mxu0 0.0
    %324 = vmatprep.subr.mxu0 0.0
    %325 = vmatpush1.msra.mxu0 0.0
    %326 = vmatprep.subr.mxu0 0.0
    %327 = vmatpush1.msra.mxu0 0.0
    %328 = vmatprep.mubr.f32.mxu0 0.0
    %329 = vmatmul.mubr.f32.gmra.mrb[0].mxu0 %v257
    %v330 = vpop.f32.mrb[0].mxu0
    %v331 = vadd.f32 %v262, %v330
    %v332 = vpop.f32.mrb[0].mxu0
    %333 = vdwg.mxu0
    %v334 = vmax.f32 %v331, 0.0
    %v336 = vlaneseq
    %v337 = vshrl.u32 %v336, 7
    %v338 = vsub.s32 0, %v337
    %v339 = vrot.slane %v93, %v338
    %341 = vmatprep.subr.mxu0 0.0
    %342 = vmatpush1.msra.mxu0 %v75
    %343 = vmatprep.subr.mxu0 0.0
    %344 = vmatpush1.msra.mxu0 %v76
    %345 = vmatprep.subr.mxu0 0.0
    %346 = vmatpush1.msra.mxu0 %v77
    %347 = vmatprep.subr.mxu0 0.0
    %348 = vmatpush1.msra.mxu0 %v78
    %349 = vmatprep.subr.mxu0 0.0
    %350 = vmatpush1.msra.mxu0 %v79
    %351 = vmatprep.subr.mxu0 0.0
    %352 = vmatpush1.msra.mxu0 %v80
    %353 = vmatprep.subr.mxu0 0.0
    %354 = vmatpush1.msra.mxu0 %v81
    %355 = vmatprep.subr.mxu0 0.0
    %356 = vmatpush1.msra.mxu0 %v82
    %357 = vmatprep.subr.mxu0 0.0
    %358 = vmatpush1.msra.mxu0 %v83
    %359 = vmatprep.subr.mxu0 0.0
    %360 = vmatpush1.msra.mxu0 %v84
    %361 = vmatprep.subr.mxu0 0.0
    %362 = vmatpush1.msra.mxu0 %v85
    %363 = vmatprep.subr.mxu0 0.0
    %364 = vmatpush1.msra.mxu0 %v86
    %365 = vmatprep.subr.mxu0 0.0
    %366 = vmatpush1.msra.mxu0 %v87
    %367 = vmatprep.subr.mxu0 0.0
    %368 = vmatpush1.msra.mxu0 %v88
    %369 = vmatprep.subr.mxu0 0.0
    %370 = vmatpush1.msra.mxu0 %v89
    %371 = vmatprep.subr.mxu0 0.0
    %372 = vmatpush1.msra.mxu0 %v90
    %373 = vmatprep.subr.mxu0 0.0
    %374 = vmatpush1.msra.mxu0 0.0
    %375 = vmatprep.subr.mxu0 0.0
    %376 = vmatpush1.msra.mxu0 0.0
    %377 = vmatprep.subr.mxu0 0.0
    %378 = vmatpush1.msra.mxu0 0.0
    %379 = vmatprep.subr.mxu0 0.0
    %380 = vmatpush1.msra.mxu0 0.0
    %381 = vmatprep.subr.mxu0 0.0
    %382 = vmatpush1.msra.mxu0 0.0
    %383 = vmatprep.subr.mxu0 0.0
    %384 = vmatpush1.msra.mxu0 0.0
    %385 = vmatprep.subr.mxu0 0.0
    %386 = vmatpush1.msra.mxu0 0.0
    %387 = vmatprep.subr.mxu0 0.0
    %388 = vmatpush1.msra.mxu0 0.0
    %389 = vmatprep.subr.mxu0 0.0
    %390 = vmatpush1.msra.mxu0 0.0
    %391 = vmatprep.subr.mxu0 0.0
    %392 = vmatpush1.msra.mxu0 0.0
    %393 = vmatprep.subr.mxu0 0.0
    %394 = vmatpush1.msra.mxu0 0.0
    %395 = vmatprep.subr.mxu0 0.0
    %396 = vmatpush1.msra.mxu0 0.0
    %397 = vmatprep.subr.mxu0 0.0
    %398 = vmatpush1.msra.mxu0 0.0
    %399 = vmatprep.subr.mxu0 0.0
    %400 = vmatpush1.msra.mxu0 0.0
    %401 = vmatprep.subr.mxu0 0.0
    %402 = vmatpush1.msra.mxu0 0.0
    %403 = vmatprep.subr.mxu0 0.0
    %404 = vmatpush1.msra.mxu0 0.0
    %405 = vmatprep.mubr.f32.mxu0 0.0
    %406 = vmatmul.mubr.f32.gmra.mrb[0].mxu0 %v334
    %v407 = vpop.f32.mrb[0].mxu0
    %v408 = vadd.f32 %v339, %v407
    %v409 = vpop.f32.mrb[0].mxu0
    %410 = vdwg.mxu0
    %411 = vst [vmem:[#allocation8] sm:$0xff] %v408
    // Predicated region
    $region30: #{tpu_custom_call.1} parent=1 // pred_check
      _
    $region31: #{tpu_custom_call.1} parent=1 // pred_check_branch
      %413 = sbr.rel (0) target = $region33
    $region32: #{tpu_custom_call.1} parent=1 // pred_region
      %s415 = ssub.s32 128, 128
      %416 = vsyncadd [#allocation4], %s415
      %s418 = sshll.u32 [#allocation8], 4
      %s419 = int_to_ptr.vmem [resolvable:$true] %s418
      %421 = dma.vmem_to_hbm [thread:$0]  %s419, 128, %s4, [#allocation4]
    $region33: #{tpu_custom_call.1} parent=1 // pred_fallthru
      _
    // Predicated region
    $region34: #{tpu_custom_call.1} parent=1 // pred_check
      _
    $region35: #{tpu_custom_call.1} parent=1 // pred_check_branch
      %423 = sbr.rel (0) target = $region37
    $region36: #{tpu_custom_call.1} parent=1 // pred_region
      %424 = dma.done [#allocation4], 128
    $region37: #{tpu_custom_call.1} parent=1 // pred_fallthru
      _
    %425 = vsyncpa [#allocation3], 1
    %426 = vsyncpa [#allocation6], 1
    %427 = vsyncpa [#allocation4], 1

</llo_original>
